<compile_context>
chip_gen: v6e
topology: v6e:2x2x1
jax: 0.10.0
libtpu: 0.0.40
codegen_flags: <defaults>
</compile_context>

<pallas_src>
import functools

import jax
import jax.numpy as jnp
from jax import lax
from jax.experimental import pallas as pl
from jax.experimental.pallas import tpu as pltpu


LANE = 128  # TPU lane width; each Q/K/V weight slice is padded to this.


def _head_kernel(x_ref, w_ref, o_ref, *, bb, t, ph):
    """One grid step: `bb` batch elements of causal single-head attention.

    x_ref: (bb*T, E)   activations (compute dtype, e.g. bf16)
    w_ref: (E, 3*ph)   fused, lane-padded [Wq*scale | Wk | Wv] (compute dtype)
    o_ref: (bb, T, ph) output slab; lanes [H:ph] are exactly zero
    """
    cdt = x_ref.dtype

    # Fused QKV projection: one tall matmul, f32 accumulation on the MXU.
    qkv = jnp.dot(x_ref[...], w_ref[...],
                  preferred_element_type=jnp.float32)        # (bb*T, 3*ph) f32
    qkv = qkv.reshape(bb, t, 3 * ph)                          # lane dim unchanged

    # Lane-tile-aligned slices (offsets 0 / ph / 2*ph): no relayout.
    q = qkv[:, :, 0 * ph:1 * ph].astype(cdt)                  # (bb, T, ph)
    k = qkv[:, :, 1 * ph:2 * ph].astype(cdt)
    v = qkv[:, :, 2 * ph:3 * ph].astype(cdt)

    # Q K^T without transposing K: contract on the padded head axis (the
    # zero-padded lanes contribute exactly 0 to the sum).
    scores = jnp.einsum('bqh,bkh->bqk', q, k,
                        preferred_element_type=jnp.float32)   # (bb, T, T) f32

    # Causal mask generated in-kernel (cheap VPU filler; no HBM bias array).
    row = lax.broadcasted_iota(jnp.int32, (t, t), 0)
    col = lax.broadcasted_iota(jnp.int32, (t, t), 1)
    scores = jnp.where((row >= col)[None, :, :], scores, -1e30)

    # Numerically stable softmax; reciprocal runs on the EUP slot.
    m = jnp.max(scores, axis=-1, keepdims=True)
    e = jnp.exp(scores - m)
    denom = jnp.sum(e, axis=-1, keepdims=True)
    attn = (e * pl.reciprocal(denom, approx=True)).astype(cdt)

    # attn @ V (batched), f32 accumulation. Output lanes [H:ph] stay exactly
    # zero, so this store is a full-width (lane-dense, unmasked) vst.
    out = jnp.einsum('bqk,bkh->bqh', attn, v,
                     preferred_element_type=jnp.float32)      # (bb, T, ph)
    o_ref[...] = out.astype(o_ref.dtype)


def prepare_head_params(wq, wk, wv, *, compute_dtype=jnp.bfloat16):
    """Build the fused, scaled, lane-padded QKV weight once (param-prep time).

    wq/wk/wv: (E, H) (i.e. PyTorch Linear weight transposed).
    Returns (E, 3*ph) with Wq*H**-0.5 in lanes [0:H], Wk in [ph:ph+H],
    Wv in [2*ph:2*ph+H]; ph = H rounded up to a multiple of 128.
    """
    E, H = wq.shape
    ph = ((H + LANE - 1) // LANE) * LANE
    scale = H ** (-0.5)
    w = jnp.zeros((E, 3 * ph), dtype=jnp.float32)
    w = w.at[:, 0 * ph:0 * ph + H].set(wq.astype(jnp.float32) * scale)
    w = w.at[:, 1 * ph:1 * ph + H].set(wk.astype(jnp.float32))
    w = w.at[:, 2 * ph:2 * ph + H].set(wv.astype(jnp.float32))
    return w.astype(compute_dtype)


def head_forward(x, w_qkv, head_size, *, batch_block=None,
                 compute_dtype=jnp.bfloat16):
    """x: (B, T, E); w_qkv from prepare_head_params. Returns (B, T, head_size)."""
    B, T, E = x.shape
    H = head_size
    ph = w_qkv.shape[1] // 3
    assert w_qkv.shape[0] == E and ph >= H and ph % LANE == 0

    if batch_block is None:
        # >= 2 parallel grid steps so both v7x TensorCores get work, provided
        # the resulting x block keeps sublane-aligned (multiple-of-8) rows.
        if B % 2 == 0 and ((B // 2) * T) % 8 == 0:
            batch_block = B // 2
        else:
            batch_block = B
    assert B % batch_block == 0, "batch_block must divide B"
    num_steps = B // batch_block
    assert num_steps == 1 or (batch_block * T) % 8 == 0

    # Per-call activation prep only; all weight prep lives in prepare_head_params.
    x2d = x.reshape(B * T, E).astype(compute_dtype)
    w_qkv = w_qkv.astype(compute_dtype)  # no-op when prepared in this dtype

    kernel = functools.partial(_head_kernel, bb=batch_block, t=T, ph=ph)

    out_pad = pl.pallas_call(
        kernel,
        out_shape=jax.ShapeDtypeStruct((B, T, ph), x.dtype),
        grid=(num_steps,),
        in_specs=[
            pl.BlockSpec((batch_block * T, E), lambda b: (b, 0)),
            pl.BlockSpec((E, 3 * ph), lambda b: (0, 0)),
        ],
        out_specs=pl.BlockSpec((batch_block, T, ph), lambda b: (b, 0, 0)),
        compiler_params=pltpu.CompilerParams(
            dimension_semantics=("parallel",)),
    )(x2d, w_qkv)

    # Drop the zero padding lanes (wrapper-side layout plumbing, not compute).
    return out_pad[:, :, :H]


def head_reference(x, wk, wq, wv):
    """Pure-JAX f32 reference matching the PyTorch forward (eval mode)."""
    k = x @ wk
    q = x @ wq
    v = x @ wv
    scores = (q @ jnp.swapaxes(k, -2, -1)) * (k.shape[-1] ** -0.5)
    T = x.shape[1]
    mask = jnp.tril(jnp.ones((T, T), dtype=bool))
    scores = jnp.where(mask, scores, -jnp.inf)
    attn = jax.nn.softmax(scores, axis=-1)
    return attn @ v


if __name__ == "__main__":
    # Module hyperparams (small, consistent with the forward pass)
    batch = 2
    block_size = 8       # seq_len == block_size here
    embed_size = 32
    head_size = 16

    key = jax.random.PRNGKey(0)
    kx, kk, kq, kv = jax.random.split(key, 4)

    x = jax.random.normal(kx, (batch, block_size, embed_size), dtype=jnp.float32)
    # Deterministic init of the three bias-free Linear layers, stored as (E, H)
    wk = jax.random.normal(kk, (embed_size, head_size), dtype=jnp.float32) * 0.1
    wq = jax.random.normal(kq, (embed_size, head_size), dtype=jnp.float32) * 0.1
    wv = jax.random.normal(kv, (embed_size, head_size), dtype=jnp.float32) * 0.1

    ref = head_reference(x, wk, wq, wv)

    # Fused / padded weights built once (hoisted out of the per-call path).
    w_qkv_bf16 = prepare_head_params(wq, wk, wv, compute_dtype=jnp.bfloat16)
    w_qkv_f32 = prepare_head_params(wq, wk, wv, compute_dtype=jnp.float32)

    # Default path: bf16 MXU operands, f32 accumulation, grid=(2,) "parallel"
    # (one batch element per step -> both v7x TensorCores busy).
    out = head_forward(x, w_qkv_bf16, head_size)
    out = jax.block_until_ready(out)
    assert out.shape == (batch, block_size, head_size)
    assert jnp.allclose(out, ref, atol=2e-2, rtol=2e-2), "bf16 kernel mismatch"

    # Whole-batch-per-step variant (grid=(1,), the single-TC v5e/v6e choice).
    out_wb = head_forward(x, w_qkv_bf16, head_size, batch_block=batch)
    out_wb = jax.block_until_ready(out_wb)
    assert jnp.allclose(out_wb, ref, atol=2e-2, rtol=2e-2), "whole-batch mismatch"

    # Full-precision operand path (same kernel, f32 operands). Tolerance stays
    # loose on purpose: pl.reciprocal(approx=True) is ~1e-3/1e-4 relative.
    out_f32 = head_forward(x, w_qkv_f32, head_size, compute_dtype=jnp.float32)
    out_f32 = jax.block_until_ready(out_f32)
    assert jnp.allclose(out_f32, ref, atol=1e-2, rtol=1e-2), "f32 kernel mismatch"

    print("KERNEL_OK")
</pallas_src>

<mosaic_0001>
module attributes {stable_mosaic.version = 11 : i64} {
  func.func @_head_kernel(%arg0: i32, %arg1: memref<8x32xbf16, #tpu.memory_space<vmem>>, %arg2: memref<32x384xbf16, #tpu.memory_space<vmem>>, %arg3: memref<1x8x128xf32, #tpu.memory_space<vmem>>) attributes {dimension_semantics = [#tpu.dimension_semantics<parallel>], iteration_bounds = array<i64: 2>, scalar_prefetch = 0 : i64, scratch_operands = 0 : i64, tpu.core_type = #tpu.core_type<tc>, window_params = [{transform_indices = @transform_0, window_bounds = array<i64: 8, 32>}, {pipeline_mode = #tpu.pipeline_mode<synchronous>, transform_indices = @transform_1, window_bounds = array<i64: 32, 384>}, {transform_indices = @transform_2, window_bounds = array<i64: 1, 8, 128>}]} {
    %c0 = arith.constant 0 : index
    %c0_0 = arith.constant 0 : index
    %0 = vector.load %arg1[%c0, %c0_0] : memref<8x32xbf16, #tpu.memory_space<vmem>>, vector<8x32xbf16>
    %c0_1 = arith.constant 0 : index
    %c0_2 = arith.constant 0 : index
    %1 = vector.load %arg2[%c0_1, %c0_2] : memref<32x384xbf16, #tpu.memory_space<vmem>>, vector<32x384xbf16>
    %cst = arith.constant dense<0.000000e+00> : vector<8x384xf32>
    %2 = tpu.matmul %0, %1, %cst {dimension_numbers = #tpu.dot_dimension_numbers<[1], [0], [0], [1], [0, 0, 1, 1], [], []>} : vector<8x32xbf16>, vector<32x384xbf16>, vector<8x384xf32> -> vector<8x384xf32>
    %3 = vector.shape_cast %2 : vector<8x384xf32> to vector<1x8x384xf32>
    %4 = vector.extract_strided_slice %3 {offsets = [0, 0, 0], sizes = [1, 8, 128], strides = [1, 1, 1]} : vector<1x8x384xf32> to vector<1x8x128xf32>
    %5 = arith.truncf %4 : vector<1x8x128xf32> to vector<1x8x128xbf16>
    %6 = vector.extract_strided_slice %3 {offsets = [0, 0, 128], sizes = [1, 8, 128], strides = [1, 1, 1]} : vector<1x8x384xf32> to vector<1x8x128xf32>
    %7 = arith.truncf %6 : vector<1x8x128xf32> to vector<1x8x128xbf16>
    %8 = vector.extract_strided_slice %3 {offsets = [0, 0, 256], sizes = [1, 8, 128], strides = [1, 1, 1]} : vector<1x8x384xf32> to vector<1x8x128xf32>
    %9 = arith.truncf %8 : vector<1x8x128xf32> to vector<1x8x128xbf16>
    "tpu.trace_start"() <{level = 10 : i32, message = "bqh,bkh->bqk"}> : () -> ()
    %cst_3 = arith.constant dense<0.000000e+00> : vector<1x8x8xf32>
    %10 = tpu.matmul %5, %7, %cst_3 {dimension_numbers = #tpu.dot_dimension_numbers<[2], [2], [1], [1], [0, 0, 0, 1, 1, 1], [0], [0]>} : vector<1x8x128xbf16>, vector<1x8x128xbf16>, vector<1x8x8xf32> -> vector<1x8x8xf32>
    "tpu.trace_stop"() : () -> ()
    %11 = tpu.iota {dimensions = array<i32: 0>} : vector<8x8xi32>
    %12 = tpu.iota {dimensions = array<i32: 1>} : vector<8x8xi32>
    %13 = arith.cmpi sge, %11, %12 : vector<8x8xi32>
    %14 = vector.shape_cast %13 : vector<8x8xi1> to vector<1x8x8xi1>
    %cst_4 = arith.constant -1.000000e+30 : f32
    %15 = vector.broadcast %cst_4 : f32 to vector<1x8x8xf32>
    %16 = arith.select %14, %10, %15 : vector<1x8x8xi1>, vector<1x8x8xf32>
    %cst_5 = arith.constant dense<0xFF800000> : vector<1x8xf32>
    %17 = vector.multi_reduction <maximumf>, %16, %cst_5 [2] : vector<1x8x8xf32> to vector<1x8xf32>
    %18 = vector.shape_cast %17 : vector<1x8xf32> to vector<1x8x1xf32>
    %19 = vector.broadcast %18 : vector<1x8x1xf32> to vector<1x8x8xf32>
    %20 = arith.subf %16, %19 : vector<1x8x8xf32>
    %21 = math.exp %20 : vector<1x8x8xf32>
    %cst_6 = arith.constant dense<0.000000e+00> : vector<1x8xf32>
    %22 = vector.multi_reduction <add>, %21, %cst_6 [2] : vector<1x8x8xf32> to vector<1x8xf32>
    %23 = vector.shape_cast %22 : vector<1x8xf32> to vector<1x8x1xf32>
    %24 = tpu.reciprocal %23 {approx = true} : vector<1x8x1xf32> -> vector<1x8x1xf32>
    %25 = vector.broadcast %24 : vector<1x8x1xf32> to vector<1x8x8xf32>
    %26 = arith.mulf %21, %25 : vector<1x8x8xf32>
    %27 = arith.truncf %26 : vector<1x8x8xf32> to vector<1x8x8xbf16>
    "tpu.trace_start"() <{level = 10 : i32, message = "bqk,bkh->bqh"}> : () -> ()
    %cst_7 = arith.constant dense<0.000000e+00> : vector<1x8x128xf32>
    %28 = tpu.matmul %27, %9, %cst_7 {dimension_numbers = #tpu.dot_dimension_numbers<[2], [1], [1], [2], [0, 0, 0, 1, 1, 2], [0], [0]>} : vector<1x8x8xbf16>, vector<1x8x128xbf16>, vector<1x8x128xf32> -> vector<1x8x128xf32>
    "tpu.trace_stop"() : () -> ()
    %c0_8 = arith.constant 0 : index
    %c0_9 = arith.constant 0 : index
    %c0_10 = arith.constant 0 : index
    %29 = vector.load %arg3[%c0_8, %c0_9, %c0_10] : memref<1x8x128xf32, #tpu.memory_space<vmem>>, vector<1x8x128xf32>
    tpu.vector_store %arg3[%c0_8, %c0_9, %c0_10], %28 {strides = array<i32>} : memref<1x8x128xf32, #tpu.memory_space<vmem>>, vector<1x8x128xf32>,
    return
  }
  func.func @transform_0(%arg0: i32) -> (i32, i32) {
    %c0_i32 = arith.constant 0 : i32
    %c0_i32_0 = arith.constant 0 : i32
    return %arg0, %c0_i32 : i32, i32
  }
  func.func @transform_1(%arg0: i32) -> (i32, i32) {
    %c0_i32 = arith.constant 0 : i32
    %c0_i32_0 = arith.constant 0 : i32
    %c0_i32_1 = arith.constant 0 : i32
    return %c0_i32, %c0_i32_0 : i32, i32
  }
  func.func @transform_2(%arg0: i32) -> (i32, i32, i32) {
    %c0_i32 = arith.constant 0 : i32
    %c0_i32_0 = arith.constant 0 : i32
    %c0_i32_1 = arith.constant 0 : i32
    return %arg0, %c0_i32, %c0_i32_0 : i32, i32, i32
  }
}

</mosaic_0001>

<llo_original>
// kernel: tpu_custom_call.1
$region0: #{tpu_custom_call.1}
  #allocation0 [shape = 'u32[]', space=smem, size = 0x4, offset = 0x4, fixed_abs, tag = 'smem constant byte address 0x4 - core index']
  #allocation1 [shape = 'u32[144,128]{1,0:T(1,128)}', space=vmem, size = 0x12000, scoped, tag = 'internal scratch']
  %s0 = inlined_call_operand.hbm [shape: bf16[16,32], index: 0, kind: input, shape index: {}]
  %s1 = inlined_call_operand.hbm [shape: bf16[32,384], index: 1, kind: input, shape index: {}]
  %s2 = inlined_call_operand.hbm [shape: f32[2,8,128], index: 2, kind: output, shape index: {}]
  %s3 = sld [smem:[#allocation0]]
  $region49: #{tpu_custom_call.1} parent=0
    _
  %s5 = ssub.s32 1, %s3
  %s6 = scalar_select 0, %s5, %s3
  $region1: #{tpu_custom_call.1} parent=0
    #allocation2 [shape = 'u8[4096]{0}', space=vmem, size = 0x1000, scoped, tag = 'input window, operand 0']
    #allocation3 [shape = 's32[2]{0}', space=sflag, size = 0x8, scoped, tag = 'scoped memory for tpu_custom_call.1']
    #allocation4 [shape = 's32[2]{0}', space=sflag, size = 0x8, scoped, tag = 'scoped memory for tpu_custom_call.1']
    #allocation5 [shape = 'u8[24576]{0}', space=vmem, size = 0x6000, scoped, tag = 'input window, operand 1, single buffered']
    #allocation6 [shape = 's32[1]{0}', space=sflag, size = 0x4, scoped, tag = 'scoped memory for tpu_custom_call.1']
    #allocation7 [shape = 'u8[8192]{0}', space=vmem, size = 0x2000, scoped, tag = 'output window, operand 0']
    %7 = vsyncpa [#allocation3], 0
    %s8 = scalar_lea.sflag [#allocation3], 1
    %9 = vsyncpa %s8, 0
    %10 = vsyncpa [#allocation6], 0
    %11 = vsyncpa [#allocation4], 0
    %s12 = scalar_lea.sflag [#allocation4], 1
    %13 = vsyncpa %s12, 0
    loop: start=0, step=1, limit=4
    $region2: #{tpu_custom_call.1} parent=1 // loop_pre_header
      _
    $region3: #{tpu_custom_call.1} parent=1 // loop_header
      %s15 = sphi 0, %s19
      %p16 = scmp.ge.s32.totalorder %s15, 4
      %s25 = sphi 0, %s27
      %s28 = sphi 0, %s25
      %s29 = sphi 0, %s28
      %s45 = sphi 0, %s29
      %s49 = sphi 0, %s49
      %s51 = sphi 0, %s49
      %s52 = sphi 0, %s51
      %s66 = sphi 0, %s52
      %s72 = sphi 0, %s74
      %s75 = sphi 0, %s72
      %s76 = sphi 0, %s75
      %s92 = sphi 0, %s76
    $region4: #{tpu_custom_call.1} parent=1 // loop_header_branch
      %18 = sbr.rel (%p16) target = $region8
    $region5: #{tpu_custom_call.1} parent=1 // loop_body
      %s20 = ssub.s32 %s15, 1
      %s21 = ssub.s32 %s15, 2
      %s22 = sadd.s32 %s15, 1
      %s23 = ssub.s32 %s15, %s22
      %p24 = scmp.eq.s32.totalorder %s23, 0
      %s26 = sadd.s32 %s25, 1
      %s27 = scalar_select %p24, %s25, %s26
      %p30 = pneg %p24
      %p31 = scmp.eq.s32.totalorder %s15, 1
      %p32 = por %p30, %p31
      %p33 = scmp.ne.s32.totalorder %s25, %s28
      %p34 = scmp.eq.s32.totalorder %s15, 0
      %p35 = por %p33, %p34
      %p36 = scmp.ne.s32.totalorder %s25, %s28
      %p37 = scmp.eq.s32.totalorder %s20, 1
      %p38 = por %p36, %p37
      %p39 = scmp.ne.s32.totalorder %s28, %s29
      %p40 = scmp.eq.s32.totalorder %s20, 0
      %p41 = por %p39, %p40
      %p42 = scmp.ne.s32.totalorder %s28, %s29
      %p43 = scmp.eq.s32.totalorder %s21, 1
      %p44 = por %p42, %p43
      %p46 = scmp.ne.s32.totalorder %s29, %s45
      %p47 = scmp.eq.s32.totalorder %s21, 0
      %p48 = por %p46, %p47
      %s50 = sadd.s32 %s49, 1
      %p53 = scmp.eq.s32.totalorder %s15, 1
      %p54 = scmp.ne.s32.totalorder %s49, %s51
      %p55 = scmp.eq.s32.totalorder %s15, 0
      %p56 = por %p54, %p55
      %p57 = scmp.ne.s32.totalorder %s49, %s51
      %p58 = scmp.eq.s32.totalorder %s20, 1
      %p59 = por %p57, %p58
      %p60 = scmp.ne.s32.totalorder %s51, %s52
      %p61 = scmp.eq.s32.totalorder %s20, 0
      %p62 = por %p60, %p61
      %p63 = scmp.ne.s32.totalorder %s51, %s52
      %p64 = scmp.eq.s32.totalorder %s21, 1
      %p65 = por %p63, %p64
      %p67 = scmp.ne.s32.totalorder %s52, %s66
      %p68 = scmp.eq.s32.totalorder %s21, 0
      %p69 = por %p67, %p68
      %s70 = ssub.s32 %s15, %s22
      %p71 = scmp.eq.s32.totalorder %s70, 0
      %s73 = sadd.s32 %s72, 1
      %s74 = scalar_select %p71, %s72, %s73
      %p77 = pneg %p71
      %p78 = scmp.eq.s32.totalorder %s15, 1
      %p79 = por %p77, %p78
      %p80 = scmp.ne.s32.totalorder %s72, %s75
      %p81 = scmp.eq.s32.totalorder %s15, 0
      %p82 = por %p80, %p81
      %p83 = scmp.ne.s32.totalorder %s72, %s75
      %p84 = scmp.eq.s32.totalorder %s20, 1
      %p85 = por %p83, %p84
      %p86 = scmp.ne.s32.totalorder %s75, %s76
      %p87 = scmp.eq.s32.totalorder %s20, 0
      %p88 = por %p86, %p87
      %p89 = scmp.ne.s32.totalorder %s75, %s76
      %p90 = scmp.eq.s32.totalorder %s21, 1
      %p91 = por %p89, %p90
      %p93 = scmp.ne.s32.totalorder %s76, %s92
      %p94 = scmp.eq.s32.totalorder %s21, 0
      %p95 = por %p93, %p94
      %p96 = scmp.le.s32.totalorder 1, %s15
      %p97 = scmp.lt.s32.totalorder %s15, 3
      %p98 = pnand %p96, %p97
      %p99 = pneg %p98
      // Predicated region
      $region9: #{tpu_custom_call.1} parent=5 // pred_check
        _
      $region10: #{tpu_custom_call.1} parent=5 // pred_check_branch
        %101 = sbr.rel (%p98) target = $region12
      $region11: #{tpu_custom_call.1} parent=5 // pred_region
        %s102 = ssub.s32 %s15, 1
        // Predicated region
        $region13: #{tpu_custom_call.1} parent=11 // pred_check
          %p103 = pneg %p62
        $region14: #{tpu_custom_call.1} parent=11 // pred_check_branch
          %105 = sbr.rel (%p103) target = $region16
        $region15: #{tpu_custom_call.1} parent=11 // pred_region
          %s107 = ssub.s32 768, 768
          %108 = vsyncadd [#allocation6], %s107
          %s109 = sshll.u32 [#allocation5], 4
          %s110 = int_to_ptr.vmem [resolvable:$true] %s109
          %115 = dma.hbm_to_vmem [thread:$0]  %s1, 768, %s110, [#allocation6], 192, 192, 12
        $region16: #{tpu_custom_call.1} parent=11 // pred_fallthru
          _
      $region12: #{tpu_custom_call.1} parent=5 // pred_fallthru
        _
      %p116 = scmp.lt.s32.totalorder %s15, 2
      // Predicated region
      $region17: #{tpu_custom_call.1} parent=5 // pred_check
        %p117 = pneg %p116
      $region18: #{tpu_custom_call.1} parent=5 // pred_check_branch
        %119 = sbr.rel (%p117) target = $region20
      $region19: #{tpu_custom_call.1} parent=5 // pred_region
        // Predicated region
        $region21: #{tpu_custom_call.1} parent=19 // pred_check
          %p120 = pneg %p35
        $region22: #{tpu_custom_call.1} parent=19 // pred_check_branch
          %122 = sbr.rel (%p120) target = $region24
        $region23: #{tpu_custom_call.1} parent=19 // pred_region
          %s123 = sand.u32 %s25, 1
          %s124 = scalar_lea.sflag [#allocation3], %s123
          %s125 = sand.u32 %s25, 1
          %s126 = smul.addr %s125, 4
          %s127 = scalar_lea.vmem [#allocation2], %s126
          %s129 = ssub.s32 64, 64
          %130 = vsyncadd %s124, %s129
          %s131 = smul.addr %s15, 64
          %s132 = scalar_lea.hbm %s0, %s131
          %s134 = sshll.u32 %s127, 4
          %s135 = int_to_ptr.vmem [resolvable:$true] %s134
          %137 = dma.hbm_to_vmem [thread:$0]  %s132, 64, %s135, %s124
        $region24: #{tpu_custom_call.1} parent=19 // pred_fallthru
          _
      $region20: #{tpu_custom_call.1} parent=5 // pred_fallthru
        _
      %p138 = scmp.le.s32.totalorder 1, %s15
      %p139 = scmp.lt.s32.totalorder %s15, 3
      %p140 = pnand %p138, %p139
      %p141 = pneg %p140
      // Predicated region
      $region25: #{tpu_custom_call.1} parent=5 // pred_check
        _
      $region26: #{tpu_custom_call.1} parent=5 // pred_check_branch
        %143 = sbr.rel (%p140) target = $region28
      $region27: #{tpu_custom_call.1} parent=5 // pred_region
        %s144 = ssub.s32 %s15, 1
        %s145 = sand.u32 %s28, 1
        %s146 = scalar_lea.sflag [#allocation3], %s145
        %s147 = sand.u32 %s28, 1
        %s148 = smul.addr %s147, 4
        %s149 = scalar_lea.vmem [#allocation2], %s148
        // Predicated region
        $region29: #{tpu_custom_call.1} parent=27 // pred_check
          %p150 = pneg %p41
        $region30: #{tpu_custom_call.1} parent=27 // pred_check_branch
          %152 = sbr.rel (%p150) target = $region32
        $region31: #{tpu_custom_call.1} parent=27 // pred_region
          %153 = dma.done %s146, 64
        $region32: #{tpu_custom_call.1} parent=27 // pred_fallthru
          _
        // Predicated region
        $region33: #{tpu_custom_call.1} parent=27 // pred_check
          %p154 = pneg %p62
        $region34: #{tpu_custom_call.1} parent=27 // pred_check_branch
          %156 = sbr.rel (%p154) target = $region36
        $region35: #{tpu_custom_call.1} parent=27 // pred_region
          %157 = dma.done [#allocation6], 768
        $region36: #{tpu_custom_call.1} parent=27 // pred_fallthru
          _
        %s158 = sand.u32 %s28, 1
        %s159 = scalar_lea.sflag [#allocation3], %s158
        %s160 = sand.u32 %s28, 1
        %s161 = smul.addr %s160, 4
        %s162 = scalar_lea.vmem [#allocation2], %s161
        %p163 = pneg %p41
        %p164 = pneg %p38
        %p165 = pneg %p62
        %p166 = pneg %p59
        %p167 = pneg %p88
        %p168 = pneg %p85
        %s169 = sand.u32 %s75, 1
        %s170 = scalar_lea.sflag [#allocation4], %s169
        %s171 = sand.u32 %s75, 1
        %s172 = smul.addr %s171, 8
        %s173 = scalar_lea.vmem [#allocation7], %s172
        %v175 = vld [vmem:[%s149] sm:$0xf]
        %v176 = vld [vmem:[#allocation5] sm:$0xff]
        %v177 = vld [vmem:[#allocation5 + $0x8] sm:$0xf]
        %v178 = vld [vmem:[#allocation5 + $0xc] sm:$0xff]
        %v179 = vld [vmem:[#allocation5 + $0x14] sm:$0xf]
        %v180 = vld [vmem:[#allocation5 + $0x18] sm:$0xff]
        %v181 = vld [vmem:[#allocation5 + $0x20] sm:$0xf]
        %v182 = vld [vmem:[#allocation5 + $0x24] sm:$0xff]
        %v183 = vld [vmem:[#allocation5 + $0x2c] sm:$0xf]
        %v192 = vunpack.c.l.b16 %v176
        %v193 = vunpack.c.h.b16 %v176
        %v194 = vunpack.c.l.b16 %v177
        %v195 = vunpack.c.l.b16 %v178
        %v196 = vunpack.c.h.b16 %v178
        %v197 = vunpack.c.l.b16 %v179
        %v198 = vunpack.c.l.b16 %v180
        %v199 = vunpack.c.h.b16 %v180
        %v200 = vunpack.c.l.b16 %v181
        %v201 = vunpack.c.l.b16 %v182
        %v202 = vunpack.c.h.b16 %v182
        %v203 = vunpack.c.l.b16 %v183
        %v204 = vpack.c.b16 %v195, %v192
        %v205 = vpack.c.b16 %v196, %v193
        %v206 = vpack.c.b16 %v197, %v194
        %v207 = vpack.c.b16 %v201, %v198
        %v208 = vpack.c.b16 %v202, %v199
        %v209 = vpack.c.b16 %v203, %v200
        %vm216 = vcmask 261120
        %v218 = vsel %vm216, %v175, 0
        %220 = vmatprep.subr.bf16.mxu0 0
        %221 = vmatpush1.bf16.msra.mxu0 0
        %222 = vmatprep.subr.bf16.mxu0 0
        %223 = vmatpush1.bf16.msra.mxu0 0
        %224 = vmatprep.subr.bf16.mxu0 0
        %225 = vmatpush1.bf16.msra.mxu0 0
        %226 = vmatprep.subr.bf16.mxu0 0
        %227 = vmatpush1.bf16.msra.mxu0 0
        %228 = vmatprep.subr.bf16.mxu0 0
        %229 = vmatpush1.bf16.msra.mxu0 0
        %230 = vmatprep.subr.bf16.mxu0 0
        %231 = vmatpush1.bf16.msra.mxu0 0
        %232 = vmatprep.subr.bf16.mxu0 %v208
        %233 = vmatpush1.bf16.msra.mxu0 %v207
        %234 = vmatprep.subr.bf16.mxu0 %v205
        %235 = vmatpush1.bf16.msra.mxu0 %v204
        %236 = vmatprep.subr.bf16.mxu0 0
        %237 = vmatpush2.bf16.msra.mxu0 0
        %238 = vmatprep.subr.bf16.mxu0 0
        %239 = vmatpush2.bf16.msra.mxu0 0
        %240 = vmatprep.subr.bf16.mxu0 0
        %241 = vmatpush2.bf16.msra.mxu0 0
        %242 = vmatprep.subr.bf16.mxu0 0
        %243 = vmatpush2.bf16.msra.mxu0 0
        %244 = vmatprep.subr.bf16.mxu0 0
        %245 = vmatpush2.bf16.msra.mxu0 0
        %246 = vmatprep.subr.bf16.mxu0 0
        %247 = vmatpush2.bf16.msra.mxu0 0
        %248 = vmatprep.subr.bf16.mxu0 0
        %249 = vmatpush2.bf16.msra.mxu0 0
        %250 = vmatprep.subr.bf16.mxu0 0
        %251 = vmatpush2.bf16.msra.mxu0 0
        %252 = vmatprep.mubr.bf16.mxu0 0
        %253 = vmatmul.mubr.bf16.gmra.mxu0 %v218
        %v254 = vpop.f32.mrf.mxu0
        %v255 = vadd.f32 0.0, %v254
        %v256 = vpop.f32.mrf.mxu0
        %v257 = vadd.f32 0.0, %v256
        %v258 = vpop.f32.mrf.mxu0
        %v259 = vpop.f32.mrf.mxu0
        %260 = vdwg.mxu0
        %261 = vmatprep.subr.bf16.mxu0 0
        %262 = vmatpush1.bf16.msra.mxu0 0
        %263 = vmatprep.subr.bf16.mxu0 0
        %264 = vmatpush1.bf16.msra.mxu0 0
        %265 = vmatprep.subr.bf16.mxu0 0
        %266 = vmatpush1.bf16.msra.mxu0 0
        %267 = vmatprep.subr.bf16.mxu0 0
        %268 = vmatpush1.bf16.msra.mxu0 0
        %269 = vmatprep.subr.bf16.mxu0 0
        %270 = vmatpush1.bf16.msra.mxu0 0
        %271 = vmatprep.subr.bf16.mxu0 0
        %272 = vmatpush1.bf16.msra.mxu0 0
        %273 = vmatprep.subr.bf16.mxu0 0
        %274 = vmatpush1.bf16.msra.mxu0 %v209
        %275 = vmatprep.subr.bf16.mxu0 0
        %276 = vmatpush1.bf16.msra.mxu0 %v206
        %277 = vmatprep.subr.bf16.mxu0 0
        %278 = vmatpush2.bf16.msra.mxu0 0
        %279 = vmatprep.subr.bf16.mxu0 0
        %280 = vmatpush2.bf16.msra.mxu0 0
        %281 = vmatprep.subr.bf16.mxu0 0
        %282 = vmatpush2.bf16.msra.mxu0 0
        %283 = vmatprep.subr.bf16.mxu0 0
        %284 = vmatpush2.bf16.msra.mxu0 0
        %285 = vmatprep.subr.bf16.mxu0 0
        %286 = vmatpush2.bf16.msra.mxu0 0
        %287 = vmatprep.subr.bf16.mxu0 0
        %288 = vmatpush2.bf16.msra.mxu0 0
        %289 = vmatprep.subr.bf16.mxu0 0
        %290 = vmatpush2.bf16.msra.mxu0 0
        %291 = vmatprep.subr.bf16.mxu0 0
        %292 = vmatpush2.bf16.msra.mxu0 0
        %293 = vmatprep.mubr.bf16.mxu0 0
        %294 = vmatmul.mubr.bf16.gmra.mxu0 %v218
        %v295 = vpop.f32.mrf.mxu0
        %v296 = vadd.f32 0.0, %v295
        %v297 = vpop.f32.mrf.mxu0
        %v298 = vpop.f32.mrf.mxu0
        %v299 = vpop.f32.mrf.mxu0
        %300 = vdwg.mxu0
        %v301 = vpack.c.bf16 %v255, %v255
        %v302 = vpack.c.bf16 %v257, %v257
        %v303 = vpack.c.bf16 %v296, %v296
        %304 = vmatprep.subr.bf16.mxu0 0
        %305 = vmatpush1.bf16.xpose.msra.mxu0 0
        %306 = vmatprep.subr.bf16.mxu0 0
        %307 = vmatpush1.bf16.xpose.msra.mxu0 0
        %308 = vmatprep.subr.bf16.mxu0 0
        %309 = vmatpush1.bf16.xpose.msra.mxu0 0
        %310 = vmatprep.subr.bf16.mxu0 0
        %311 = vmatpush1.bf16.xpose.msra.mxu0 0
        %312 = vmatprep.subr.bf16.mxu0 0
        %313 = vmatpush1.bf16.xpose.msra.mxu0 0
        %314 = vmatprep.subr.bf16.mxu0 0
        %315 = vmatpush1.bf16.xpose.msra.mxu0 0
        %316 = vmatprep.subr.bf16.mxu0 0
        %317 = vmatpush1.bf16.xpose.msra.mxu0 0
        %318 = vmatprep.subr.bf16.mxu0 0
        %319 = vmatpush1.bf16.xpose.msra.mxu0 %v302
        %320 = vmatprep.subr.bf16.mxu0 0
        %321 = vmatpush2.bf16.xpose.msra.mxu0 0
        %322 = vmatprep.subr.bf16.mxu0 0
        %323 = vmatpush2.bf16.xpose.msra.mxu0 0
        %324 = vmatprep.subr.bf16.mxu0 0
        %325 = vmatpush2.bf16.xpose.msra.mxu0 0
        %326 = vmatprep.subr.bf16.mxu0 0
        %327 = vmatpush2.bf16.xpose.msra.mxu0 0
        %328 = vmatprep.subr.bf16.mxu0 0
        %329 = vmatpush2.bf16.xpose.msra.mxu0 0
        %330 = vmatprep.subr.bf16.mxu0 0
        %331 = vmatpush2.bf16.xpose.msra.mxu0 0
        %332 = vmatprep.subr.bf16.mxu0 0
        %333 = vmatpush2.bf16.xpose.msra.mxu0 0
        %334 = vmatprep.subr.bf16.mxu0 0
        %335 = vmatpush2.bf16.xpose.msra.mxu0 0
        %336 = vmatprep.mubr.bf16.mxu0 0
        %337 = vmatmul.mubr.bf16.gmra.mxu0 %v301
        %v338 = vpop.f32.mrf.mxu0
        %v339 = vadd.f32 0.0, %v338
        %v340 = vpop.f32.mrf.mxu0
        %v341 = vpop.f32.mrf.mxu0
        %v342 = vpop.f32.mrf.mxu0
        %343 = vdwg.mxu0
        %v344 = vlaneseq
        %v345 = vshrl.u32 %v344, 7
        %v346 = vlaneseq
        %v347 = vand.u32 %v346, 127
        %vm348 = vcmp.ge.s32.totalorder %v345, %v347
        %v349 = vsel %vm348, %v339, -1e+30
        %vm350 = vcmask 64512
        %v351 = vsel %vm350, %v349, -inf
        %352 = vmax.xlane.f32.xlu0 %v351
        %v353 = vpop.xlane.xlu0 %352
        %v354 = vsub.f32 %v349, %v353
        %v355 = vmul.f32 %v354, 1.442695
        %v356 = vpow.pop %v355
        %v357 = vsel %vm350, %v356, 0.0
        %358 = vadd.xlane.f32.xlu0 %v357
        %v359 = vpop.xlane.xlu0 %358
        %v360 = vrcp.pop %v359
        %v361 = vmul.f32 %v356, %v360
        %v362 = vpack.c.bf16 %v361, %v361
        %v364 = vsel %vm350, %v362, 0
        %vm366 = vcmask 1043456
        %v368 = vsel %vm366, %v303, 0
        %370 = vmatprep.subr.bf16.mxu0 0
        %371 = vmatpush1.bf16.msra.mxu0 0
        %372 = vmatprep.subr.bf16.mxu0 0
        %373 = vmatpush1.bf16.msra.mxu0 0
        %374 = vmatprep.subr.bf16.mxu0 0
        %375 = vmatpush1.bf16.msra.mxu0 0
        %376 = vmatprep.subr.bf16.mxu0 0
        %377 = vmatpush1.bf16.msra.mxu0 0
        %378 = vmatprep.subr.bf16.mxu0 0
        %379 = vmatpush1.bf16.msra.mxu0 0
        %380 = vmatprep.subr.bf16.mxu0 0
        %381 = vmatpush1.bf16.msra.mxu0 0
        %382 = vmatprep.subr.bf16.mxu0 0
        %383 = vmatpush1.bf16.msra.mxu0 0
        %384 = vmatprep.subr.bf16.mxu0 0
        %385 = vmatpush1.bf16.msra.mxu0 %v368
        %386 = vmatprep.subr.bf16.mxu0 0
        %387 = vmatpush2.bf16.msra.mxu0 0
        %388 = vmatprep.subr.bf16.mxu0 0
        %389 = vmatpush2.bf16.msra.mxu0 0
        %390 = vmatprep.subr.bf16.mxu0 0
        %391 = vmatpush2.bf16.msra.mxu0 0
        %392 = vmatprep.subr.bf16.mxu0 0
        %393 = vmatpush2.bf16.msra.mxu0 0
        %394 = vmatprep.subr.bf16.mxu0 0
        %395 = vmatpush2.bf16.msra.mxu0 0
        %396 = vmatprep.subr.bf16.mxu0 0
        %397 = vmatpush2.bf16.msra.mxu0 0
        %398 = vmatprep.subr.bf16.mxu0 0
        %399 = vmatpush2.bf16.msra.mxu0 0
        %400 = vmatprep.subr.bf16.mxu0 0
        %401 = vmatpush2.bf16.msra.mxu0 0
        %402 = vmatprep.mubr.bf16.mxu0 0
        %403 = vmatmul.mubr.bf16.gmra.mxu0 %v364
        %v404 = vpop.f32.mrf.mxu0
        %v405 = vadd.f32 0.0, %v404
        %v406 = vpop.f32.mrf.mxu0
        %v407 = vpop.f32.mrf.mxu0
        %v408 = vpop.f32.mrf.mxu0
        %409 = vdwg.mxu0
        %410 = vst [vmem:[%s173] sm:$0xff] %v405
        %s411 = sand.u32 %s75, 1
        %s412 = scalar_lea.sflag [#allocation4], %s411
        %s413 = sand.u32 %s75, 1
        %s414 = smul.addr %s413, 8
        %s415 = scalar_lea.vmem [#allocation7], %s414
        // Predicated region
        $region37: #{tpu_custom_call.1} parent=27 // pred_check
          %p416 = pneg %p85
        $region38: #{tpu_custom_call.1} parent=27 // pred_check_branch
          %418 = sbr.rel (%p416) target = $region40
        $region39: #{tpu_custom_call.1} parent=27 // pred_region
          %s420 = ssub.s32 128, 128
          %421 = vsyncadd %s412, %s420
          %s422 = smul.addr %s20, 128
          %s423 = scalar_lea.hbm %s2, %s422
          %s425 = sshll.u32 %s415, 4
          %s426 = int_to_ptr.vmem [resolvable:$true] %s425
          %428 = dma.vmem_to_hbm [thread:$0]  %s426, 128, %s423, %s412
        $region40: #{tpu_custom_call.1} parent=27 // pred_fallthru
          _
      $region28: #{tpu_custom_call.1} parent=5 // pred_fallthru
        _
      %p429 = scmp.le.s32.totalorder 2, %s15
      // Predicated region
      $region41: #{tpu_custom_call.1} parent=5 // pred_check
        %p430 = pneg %p429
      $region42: #{tpu_custom_call.1} parent=5 // pred_check_branch
        %432 = sbr.rel (%p430) target = $region44
      $region43: #{tpu_custom_call.1} parent=5 // pred_region
        %s433 = ssub.s32 %s15, 2
        // Predicated region
        $region45: #{tpu_custom_call.1} parent=43 // pred_check
          %p434 = pneg %p91
        $region46: #{tpu_custom_call.1} parent=43 // pred_check_branch
          %436 = sbr.rel (%p434) target = $region48
        $region47: #{tpu_custom_call.1} parent=43 // pred_region
          %s437 = sand.u32 %s76, 1
          %s438 = scalar_lea.sflag [#allocation4], %s437
          %s439 = sand.u32 %s76, 1
          %s440 = smul.addr %s439, 8
          %s441 = scalar_lea.vmem [#allocation7], %s440
          %442 = dma.done %s438, 128
        $region48: #{tpu_custom_call.1} parent=43 // pred_fallthru
          _
      $region44: #{tpu_custom_call.1} parent=5 // pred_fallthru
        _
    $region6: #{tpu_custom_call.1} parent=1 // loop_footer
      %s19 = sadd.s32 1, %s15
    $region7: #{tpu_custom_call.1} parent=1 // loop_footer_branch
      %14 = sbr.rel target = $region3
    $region8: #{tpu_custom_call.1} parent=1 // loop_exit
      _
    %443 = vsyncpa [#allocation3], 1
    %s444 = scalar_lea.sflag [#allocation3], 1
    %445 = vsyncpa %s444, 1
    %446 = vsyncpa [#allocation6], 1
    %447 = vsyncpa [#allocation4], 1
    %s448 = scalar_lea.sflag [#allocation4], 1
    %449 = vsyncpa %s448, 1

</llo_original>
